<compile_context>
chip_gen: v7x
topology: tpu7x:2x2x1
jax: 0.10.0
libtpu: 0.0.40
codegen_flags: <defaults>
</compile_context>

<pallas_src>
import jax
import jax.numpy as jnp
from jax import lax
from jax.experimental import pallas as pl
from jax.experimental.pallas import tpu as pltpu

_LANE = 128

# Tensor order used everywhere:
#   0 y_pos_pred, 1 y_neg_pred, 2 y_pos_g_pos, 3 y_pos_g_neg,
#   4 y_neg_g_pos, 5 y_neg_g_neg
# Each term is (k, pos_idx, neg_idx, sign); sign=-1 -> single_loss,
# sign=+1 -> single_cons.  _LAM_OF_TERM gives the lam[] index of each term.
_TERMS = (
    (0, 0, 1, -1.0),                    # loss1 = single_loss(pos_pred, neg_pred)
    (1, 2, 4, 1.0), (2, 5, 3, 1.0),     # loss2
    (3, 3, 5, 1.0), (4, 4, 2, 1.0),     # loss3
)
_LAM_OF_TERM = (0, 1, 1, 2, 2)


def _tpu_limits():
    """Per-generation tuning: (vmem_limit_bytes, tiled_block_rows, fused_limit)."""
    vmem_cap = 64 * 1024 * 1024                     # conservative default (v7x per-TC)
    try:
        info = pltpu.get_tpu_info()
        cap = getattr(info, "vmem_capacity_bytes", None)
        if cap:
            vmem_cap = int(cap)
    except Exception:
        pass
    if vmem_cap >= 96 * 1024 * 1024:
        # v5e / v6e: 128 MiB physical VMEM -> 16 MiB f32 blocks, 64 MiB limit.
        return 64 * 1024 * 1024, 32768, 48 * 1024 * 1024
    # v7x: 64 MiB physical VMEM per TensorCore -> 8 MiB blocks, 32 MiB limit.
    return 32 * 1024 * 1024, 16384, 24 * 1024 * 1024


# ---------------------------------------------------------------------------
# Fused single-launch kernel (small / medium inputs)
# ---------------------------------------------------------------------------
def _make_fused_kernel(inv_counts):
    """Kernel computing the full scalar loss in one invocation.

    params layout (SMEM f32[20]):
      [0:3] lam, [3:8] alp, [8:13] a, [13:18] b, [18] aa, [19] cc
    """
    def kernel(params_ref, *refs_and_out):
        x_refs = refs_and_out[:6]
        out_ref = refs_and_out[6]

        lam = [params_ref[i] for i in range(3)]
        alp = [params_ref[3 + i] for i in range(5)]
        a = [params_ref[8 + i] for i in range(5)]
        b = [params_ref[13 + i] for i in range(5)]
        aa = params_ref[18]
        cc = params_ref[19]

        mean_x = []
        mean_x2 = []
        for r, inv_n in zip(x_refs, inv_counts):
            x = r[...].astype(jnp.float32)
            mean_x.append(jnp.sum(x, keepdims=True) * inv_n)        # (1, 1)
            mean_x2.append(jnp.sum(x * x, keepdims=True) * inv_n)   # (1, 1)

        # mean((x - c)^2) = E[x^2] - 2 c E[x] + c^2  (exact; a = b = 0 here).
        loss = jnp.zeros((1, 1), jnp.float32)
        for (k, p, n, sign), li in zip(_TERMS, _LAM_OF_TERM):
            cc_a = cc + alp[k]
            msd_p = mean_x2[p] - 2.0 * a[k] * mean_x[p] + a[k] * a[k]
            msd_n = mean_x2[n] - 2.0 * b[k] * mean_x[n] + b[k] * b[k]
            t = aa * (cc * cc + msd_p + msd_n
                      + sign * 2.0 * cc_a * mean_x[p]
                      - sign * 2.0 * cc_a * mean_x[n])
            loss = loss + lam[li] * t
        out_ref[...] = loss

    return kernel


def _to_2d(flat):
    """Free (no-copy) reshape of a flat vector to a lane/sublane-dense 2-D view."""
    n = int(flat.shape[0])
    if n >= _LANE and n % _LANE == 0:
        return flat.reshape(n // _LANE, _LANE)      # lane-dense
    if n >= 8 and n % 8 == 0:
        return flat.reshape(8, n // 8)              # sublane-dense fallback
    return flat.reshape(1, n)                       # tiny ragged input


def _fused_vmem_estimate(x2ds):
    """Estimated resident-VMEM bytes if all six 2-D views are kept whole."""
    total = 0
    for x in x2ds:
        r, c = int(x.shape[0]), int(x.shape[1])
        total += ((r + 7) // 8) * 8 * ((c + _LANE - 1) // _LANE) * _LANE * 4
    return total


def _loss_fused(x2ds, inv_counts, params, vmem_limit):
    out = pl.pallas_call(
        _make_fused_kernel(inv_counts),
        out_shape=jax.ShapeDtypeStruct((1, 1), jnp.float32),
        in_specs=[pl.BlockSpec(memory_space=pltpu.MemorySpace.SMEM)]
        + [pl.BlockSpec(memory_space=pltpu.MemorySpace.VMEM)] * 6,
        out_specs=pl.BlockSpec(memory_space=pltpu.MemorySpace.VMEM),
        compiler_params=pltpu.CompilerParams(vmem_limit_bytes=vmem_limit),
    )(params, *x2ds)
    return out[0, 0]


# ---------------------------------------------------------------------------
# Tiled reduction kernel (large inputs): per-tensor sum and sum-of-squares
# ---------------------------------------------------------------------------
def _make_reduce_kernel(block_rows, valid_rows):
    n_groups = block_rows // 8
    full_last = (valid_rows % block_rows) == 0      # trace-time decision

    def kernel(x_ref, sum_ref, sumsq_ref, acc_ref, acc2_ref):
        i = pl.program_id(0)
        last = pl.num_programs(0) - 1

        @pl.when(i == 0)
        def _():
            acc_ref[...] = jnp.zeros_like(acc_ref)
            acc2_ref[...] = jnp.zeros_like(acc2_ref)

        def accumulate(x):
            # (block_rows, 128) -> (block_rows//8, 8, 128): leading-axis sums
            # are pure VALU; the cross-sublane/lane reduce happens only once
            # at the final grid step.
            xg = x.reshape(n_groups, 8, _LANE)
            acc_ref[...] += jnp.sum(xg, axis=0)
            acc2_ref[...] += jnp.sum(xg * xg, axis=0)

        if full_last:
            # Every block is full: no masking anywhere (pure vld + VALU).
            accumulate(x_ref[...].astype(jnp.float32))
        else:
            @pl.when(i != last)
            def _():
                accumulate(x_ref[...].astype(jnp.float32))

            @pl.when(i == last)
            def _():
                # Only the final (partial) block pays for the OOB-row mask.
                x = x_ref[...].astype(jnp.float32)
                row = lax.broadcasted_iota(jnp.int32, x.shape, 0) + i * block_rows
                accumulate(jnp.where(row < valid_rows, x, 0.0))

        @pl.when(i == last)
        def _():
            sum_ref[...] = jnp.sum(acc_ref[...], keepdims=True)
            sumsq_ref[...] = jnp.sum(acc2_ref[...], keepdims=True)

    return kernel


def _sum_sumsq_tiled(flat, block_rows, vmem_limit):
    """Sum and sum-of-squares of a flat vector via a tiled Pallas reduction."""
    n = int(flat.shape[0])
    n_main = (n // _LANE) * _LANE
    tail_s = tail_s2 = None
    if n_main != n:
        # Ragged tail (< 128 elements) reduced in JAX; no full-tensor HBM pad
        # copy.  The aligned-prefix slice is contiguous; at worst it costs
        # what the old pad did, at best XLA leaves it in place.
        tail = flat[n_main:].astype(jnp.float32)
        tail_s = jnp.sum(tail)
        tail_s2 = jnp.sum(tail * tail)
        flat = flat[:n_main]
    if n_main == 0:
        return tail_s, tail_s2

    x2d = flat.reshape(n_main // _LANE, _LANE)      # free, lane-dense view
    rows = x2d.shape[0]
    grid = (pl.cdiv(rows, block_rows),)
    s, s2 = pl.pallas_call(
        _make_reduce_kernel(block_rows, rows),
        out_shape=(jax.ShapeDtypeStruct((1, 1), jnp.float32),
                   jax.ShapeDtypeStruct((1, 1), jnp.float32)),
        grid=grid,
        in_specs=[pl.BlockSpec((block_rows, _LANE), lambda i: (i, 0))],
        out_specs=(pl.BlockSpec((1, 1), lambda i: (0, 0)),
                   pl.BlockSpec((1, 1), lambda i: (0, 0))),
        scratch_shapes=[pltpu.VMEM((8, _LANE), jnp.float32),
                        pltpu.VMEM((8, _LANE), jnp.float32)],
        compiler_params=pltpu.CompilerParams(
            dimension_semantics=("arbitrary",),
            vmem_limit_bytes=vmem_limit),
    )(x2d)
    s, s2 = s[0, 0], s2[0, 0]
    if tail_s is not None:
        s = s + tail_s
        s2 = s2 + tail_s2
    return s, s2


def _combine_means(mean_x, mean_x2, a, b, lam, alp, aa, cc):
    loss = jnp.float32(0.0)
    for (k, p, n, sign), li in zip(_TERMS, _LAM_OF_TERM):
        cc_a = cc + alp[k]
        msd_p = mean_x2[p] - 2.0 * a[k] * mean_x[p] + a[k] ** 2
        msd_n = mean_x2[n] - 2.0 * b[k] * mean_x[n] + b[k] ** 2
        t = aa * (cc ** 2 + msd_p + msd_n
                  + sign * 2.0 * cc_a * mean_x[p]
                  - sign * 2.0 * cc_a * mean_x[n])
        loss = loss + lam[li] * t
    return loss


# ---------------------------------------------------------------------------
# Module
# ---------------------------------------------------------------------------
class LossCon3:
    """JAX/Pallas port of torch loss_con3 (a, b params initialized to zeros)."""

    def __init__(self):
        self.a = jnp.zeros((5, 1), jnp.float32)
        self.b = jnp.zeros((5, 1), jnp.float32)

    def __call__(self, y_pos_pred, y_neg_pred, y_pos_g_pos, y_pos_g_neg,
                 y_neg_g_pos, y_neg_g_neg, lam, alp, aa, cc,
                 force_tiled=False, block_rows=None):
        vmem_limit, default_br, fused_limit = _tpu_limits()
        if block_rows is None:
            block_rows = default_br
        block_rows = max(8, (int(block_rows) // 8) * 8)

        tensors = (y_pos_pred, y_neg_pred, y_pos_g_pos, y_pos_g_neg,
                   y_neg_g_pos, y_neg_g_neg)
        # Free reshapes only: no host-side pad / stack / astype copies.
        flats = [t.reshape(-1) for t in tensors]
        x2ds = [_to_2d(f) for f in flats]

        if not force_tiled and _fused_vmem_estimate(x2ds) <= fused_limit:
            inv_counts = tuple(1.0 / float(f.shape[0]) for f in flats)
            params = jnp.concatenate([
                jnp.asarray(lam, jnp.float32).reshape(-1)[:3],
                jnp.asarray(alp, jnp.float32).reshape(-1)[:5],
                self.a.reshape(-1).astype(jnp.float32),
                self.b.reshape(-1).astype(jnp.float32),
                jnp.asarray(aa, jnp.float32).reshape(1),
                jnp.asarray(cc, jnp.float32).reshape(1),
            ])
            return _loss_fused(x2ds, inv_counts, params, vmem_limit)

        # Large inputs: tiled per-tensor reduction; tiny scalar glue in JAX.
        # TODO(synk): fuse the six launches into one pallas_call (pl.ANY refs +
        # manual double-buffered DMA) and add a 2-way core split for v7x megacore.
        sums, sumsqs = zip(*[_sum_sumsq_tiled(f, block_rows, vmem_limit)
                             for f in flats])
        counts = jnp.array([f.shape[0] for f in flats], jnp.float32)
        mean_x = jnp.stack(sums) / counts
        mean_x2 = jnp.stack(sumsqs) / counts
        return _combine_means(mean_x, mean_x2, self.a[:, 0], self.b[:, 0],
                              jnp.asarray(lam, jnp.float32),
                              jnp.asarray(alp, jnp.float32), aa, cc)


# ---------------------------------------------------------------------------
# Pure-JAX reference mirroring the torch code literally
# ---------------------------------------------------------------------------
def _ref_forward(preds, lam, alp, aa, cc):
    a = jnp.zeros((5, 1), jnp.float32)
    b = jnp.zeros((5, 1), jnp.float32)

    def single(yp, yn, ak, bk, alpha, cons):
        yp = yp.reshape(-1, 1).astype(jnp.float32)
        yn = yn.reshape(-1, 1).astype(jnp.float32)
        s = 1.0 if cons else -1.0
        loss = (cc ** 2 + jnp.mean((yp - ak) ** 2) + jnp.mean((yn - bk) ** 2)
                + s * 2 * (cc + alpha) * jnp.mean(yp)
                - s * 2 * (cc + alpha) * jnp.mean(yn))
        return loss * aa

    (y_pos_pred, y_neg_pred, y_pos_g_pos,
     y_pos_g_neg, y_neg_g_pos, y_neg_g_neg) = preds
    l1 = single(y_pos_pred, y_neg_pred, a[0], b[0], alp[0], False)
    l2 = (single(y_pos_g_pos, y_neg_g_pos, a[1], b[1], alp[1], True)
          + single(y_neg_g_neg, y_pos_g_neg, a[2], b[2], alp[2], True))
    l3 = (single(y_pos_g_neg, y_neg_g_neg, a[3], b[3], alp[3], True)
          + single(y_neg_g_pos, y_pos_g_pos, a[4], b[4], alp[4], True))
    return lam[0] * l1 + lam[1] * l2 + lam[2] * l3


if __name__ == "__main__":
    key = jax.random.PRNGKey(0)
    keys = jax.random.split(key, 16)

    lam = jax.random.uniform(keys[6], (3,), jnp.float32)
    alp = jax.random.uniform(keys[7], (5,), jnp.float32)
    aa = jnp.float32(0.7)
    cc = jnp.float32(0.3)

    mod = LossCon3()

    # Small case (typical per-batch prediction vectors): fused single-launch
    # kernel path.
    shape = (128, 1)
    small = [jax.random.normal(keys[i], shape, jnp.float32) for i in range(6)]
    out_small = jax.block_until_ready(mod(*small, lam, alp, aa, cc))
    ref_small = jax.block_until_ready(
        _ref_forward(tuple(small), lam, alp, aa, cc))
    assert jnp.allclose(out_small, ref_small, atol=1e-4, rtol=1e-4), \
        (out_small, ref_small)

    # Tiled path, exercised with SMALL data by shrinking the block size:
    # multi-step grid, unmasked full blocks, masked partial last block, and
    # non-128-divisible ragged tails are all covered.
    tiled_shapes = [(19, 128), (16, 128), (33, 37), (7, 130), (256, 1), (96, 5)]
    tiled = [jax.random.normal(keys[8 + i], s, jnp.float32)
             for i, s in enumerate(tiled_shapes)]
    out_tiled = jax.block_until_ready(
        mod(*tiled, lam, alp, aa, cc, force_tiled=True, block_rows=8))
    ref_tiled = jax.block_until_ready(
        _ref_forward(tuple(tiled), lam, alp, aa, cc))
    assert jnp.allclose(out_tiled, ref_tiled, atol=5e-3, rtol=5e-3), \
        (out_tiled, ref_tiled)

    print("KERNEL_OK")
</pallas_src>

<mosaic_0001>
module attributes {stable_mosaic.version = 11 : i64} {
  func.func @kernel(%arg0: memref<20xf32, #tpu.memory_space<smem>>, %arg1: memref<1x128xf32, #tpu.memory_space<vmem>>, %arg2: memref<1x128xf32, #tpu.memory_space<vmem>>, %arg3: memref<1x128xf32, #tpu.memory_space<vmem>>, %arg4: memref<1x128xf32, #tpu.memory_space<vmem>>, %arg5: memref<1x128xf32, #tpu.memory_space<vmem>>, %arg6: memref<1x128xf32, #tpu.memory_space<vmem>>, %arg7: memref<1x1xf32, #tpu.memory_space<vmem>>) attributes {dimension_semantics = [], scalar_prefetch = 0 : i64, scratch_operands = 0 : i64, tpu.core_type = #tpu.core_type<tc>} {
    %c0 = arith.constant 0 : index
    %0 = memref.load %arg0[%c0] : memref<20xf32, #tpu.memory_space<smem>>
    %c1 = arith.constant 1 : index
    %1 = memref.load %arg0[%c1] : memref<20xf32, #tpu.memory_space<smem>>
    %c2 = arith.constant 2 : index
    %2 = memref.load %arg0[%c2] : memref<20xf32, #tpu.memory_space<smem>>
    %c3 = arith.constant 3 : index
    %3 = memref.load %arg0[%c3] : memref<20xf32, #tpu.memory_space<smem>>
    %c4 = arith.constant 4 : index
    %4 = memref.load %arg0[%c4] : memref<20xf32, #tpu.memory_space<smem>>
    %c5 = arith.constant 5 : index
    %5 = memref.load %arg0[%c5] : memref<20xf32, #tpu.memory_space<smem>>
    %c6 = arith.constant 6 : index
    %6 = memref.load %arg0[%c6] : memref<20xf32, #tpu.memory_space<smem>>
    %c7 = arith.constant 7 : index
    %7 = memref.load %arg0[%c7] : memref<20xf32, #tpu.memory_space<smem>>
    %c8 = arith.constant 8 : index
    %8 = memref.load %arg0[%c8] : memref<20xf32, #tpu.memory_space<smem>>
    %c9 = arith.constant 9 : index
    %9 = memref.load %arg0[%c9] : memref<20xf32, #tpu.memory_space<smem>>
    %c10 = arith.constant 10 : index
    %10 = memref.load %arg0[%c10] : memref<20xf32, #tpu.memory_space<smem>>
    %c11 = arith.constant 11 : index
    %11 = memref.load %arg0[%c11] : memref<20xf32, #tpu.memory_space<smem>>
    %c12 = arith.constant 12 : index
    %12 = memref.load %arg0[%c12] : memref<20xf32, #tpu.memory_space<smem>>
    %c13 = arith.constant 13 : index
    %13 = memref.load %arg0[%c13] : memref<20xf32, #tpu.memory_space<smem>>
    %c14 = arith.constant 14 : index
    %14 = memref.load %arg0[%c14] : memref<20xf32, #tpu.memory_space<smem>>
    %c15 = arith.constant 15 : index
    %15 = memref.load %arg0[%c15] : memref<20xf32, #tpu.memory_space<smem>>
    %c16 = arith.constant 16 : index
    %16 = memref.load %arg0[%c16] : memref<20xf32, #tpu.memory_space<smem>>
    %c17 = arith.constant 17 : index
    %17 = memref.load %arg0[%c17] : memref<20xf32, #tpu.memory_space<smem>>
    %c18 = arith.constant 18 : index
    %18 = memref.load %arg0[%c18] : memref<20xf32, #tpu.memory_space<smem>>
    %c19 = arith.constant 19 : index
    %19 = memref.load %arg0[%c19] : memref<20xf32, #tpu.memory_space<smem>>
    %c0_0 = arith.constant 0 : index
    %c0_1 = arith.constant 0 : index
    %20 = vector.load %arg1[%c0_0, %c0_1] : memref<1x128xf32, #tpu.memory_space<vmem>>, vector<1x128xf32>
    %21 = vector.shape_cast %20 : vector<1x128xf32> to vector<1x1x128xf32>
    %cst = arith.constant dense<0.000000e+00> : vector<1xf32>
    %22 = vector.multi_reduction <add>, %21, %cst [1, 2] : vector<1x1x128xf32> to vector<1xf32>
    %23 = vector.shape_cast %22 : vector<1xf32> to vector<1x1x1xf32>
    %24 = vector.extract %23[0, 0, 0] : f32 from vector<1x1x1xf32>
    %25 = vector.broadcast %24 : f32 to vector<1x1xf32>
    %cst_2 = arith.constant 7.812500e-03 : f32
    %26 = vector.broadcast %cst_2 : f32 to vector<1x1xf32>
    %27 = arith.mulf %25, %26 : vector<1x1xf32>
    %28 = arith.mulf %20, %20 : vector<1x128xf32>
    %29 = vector.shape_cast %28 : vector<1x128xf32> to vector<1x1x128xf32>
    %cst_3 = arith.constant dense<0.000000e+00> : vector<1xf32>
    %30 = vector.multi_reduction <add>, %29, %cst_3 [1, 2] : vector<1x1x128xf32> to vector<1xf32>
    %31 = vector.shape_cast %30 : vector<1xf32> to vector<1x1x1xf32>
    %32 = vector.extract %31[0, 0, 0] : f32 from vector<1x1x1xf32>
    %33 = vector.broadcast %32 : f32 to vector<1x1xf32>
    %cst_4 = arith.constant 7.812500e-03 : f32
    %34 = vector.broadcast %cst_4 : f32 to vector<1x1xf32>
    %35 = arith.mulf %33, %34 : vector<1x1xf32>
    %c0_5 = arith.constant 0 : index
    %c0_6 = arith.constant 0 : index
    %36 = vector.load %arg2[%c0_5, %c0_6] : memref<1x128xf32, #tpu.memory_space<vmem>>, vector<1x128xf32>
    %37 = vector.shape_cast %36 : vector<1x128xf32> to vector<1x1x128xf32>
    %cst_7 = arith.constant dense<0.000000e+00> : vector<1xf32>
    %38 = vector.multi_reduction <add>, %37, %cst_7 [1, 2] : vector<1x1x128xf32> to vector<1xf32>
    %39 = vector.shape_cast %38 : vector<1xf32> to vector<1x1x1xf32>
    %40 = vector.extract %39[0, 0, 0] : f32 from vector<1x1x1xf32>
    %41 = vector.broadcast %40 : f32 to vector<1x1xf32>
    %cst_8 = arith.constant 7.812500e-03 : f32
    %42 = vector.broadcast %cst_8 : f32 to vector<1x1xf32>
    %43 = arith.mulf %41, %42 : vector<1x1xf32>
    %44 = arith.mulf %36, %36 : vector<1x128xf32>
    %45 = vector.shape_cast %44 : vector<1x128xf32> to vector<1x1x128xf32>
    %cst_9 = arith.constant dense<0.000000e+00> : vector<1xf32>
    %46 = vector.multi_reduction <add>, %45, %cst_9 [1, 2] : vector<1x1x128xf32> to vector<1xf32>
    %47 = vector.shape_cast %46 : vector<1xf32> to vector<1x1x1xf32>
    %48 = vector.extract %47[0, 0, 0] : f32 from vector<1x1x1xf32>
    %49 = vector.broadcast %48 : f32 to vector<1x1xf32>
    %cst_10 = arith.constant 7.812500e-03 : f32
    %50 = vector.broadcast %cst_10 : f32 to vector<1x1xf32>
    %51 = arith.mulf %49, %50 : vector<1x1xf32>
    %c0_11 = arith.constant 0 : index
    %c0_12 = arith.constant 0 : index
    %52 = vector.load %arg3[%c0_11, %c0_12] : memref<1x128xf32, #tpu.memory_space<vmem>>, vector<1x128xf32>
    %53 = vector.shape_cast %52 : vector<1x128xf32> to vector<1x1x128xf32>
    %cst_13 = arith.constant dense<0.000000e+00> : vector<1xf32>
    %54 = vector.multi_reduction <add>, %53, %cst_13 [1, 2] : vector<1x1x128xf32> to vector<1xf32>
    %55 = vector.shape_cast %54 : vector<1xf32> to vector<1x1x1xf32>
    %56 = vector.extract %55[0, 0, 0] : f32 from vector<1x1x1xf32>
    %57 = vector.broadcast %56 : f32 to vector<1x1xf32>
    %cst_14 = arith.constant 7.812500e-03 : f32
    %58 = vector.broadcast %cst_14 : f32 to vector<1x1xf32>
    %59 = arith.mulf %57, %58 : vector<1x1xf32>
    %60 = arith.mulf %52, %52 : vector<1x128xf32>
    %61 = vector.shape_cast %60 : vector<1x128xf32> to vector<1x1x128xf32>
    %cst_15 = arith.constant dense<0.000000e+00> : vector<1xf32>
    %62 = vector.multi_reduction <add>, %61, %cst_15 [1, 2] : vector<1x1x128xf32> to vector<1xf32>
    %63 = vector.shape_cast %62 : vector<1xf32> to vector<1x1x1xf32>
    %64 = vector.extract %63[0, 0, 0] : f32 from vector<1x1x1xf32>
    %65 = vector.broadcast %64 : f32 to vector<1x1xf32>
    %cst_16 = arith.constant 7.812500e-03 : f32
    %66 = vector.broadcast %cst_16 : f32 to vector<1x1xf32>
    %67 = arith.mulf %65, %66 : vector<1x1xf32>
    %c0_17 = arith.constant 0 : index
    %c0_18 = arith.constant 0 : index
    %68 = vector.load %arg4[%c0_17, %c0_18] : memref<1x128xf32, #tpu.memory_space<vmem>>, vector<1x128xf32>
    %69 = vector.shape_cast %68 : vector<1x128xf32> to vector<1x1x128xf32>
    %cst_19 = arith.constant dense<0.000000e+00> : vector<1xf32>
    %70 = vector.multi_reduction <add>, %69, %cst_19 [1, 2] : vector<1x1x128xf32> to vector<1xf32>
    %71 = vector.shape_cast %70 : vector<1xf32> to vector<1x1x1xf32>
    %72 = vector.extract %71[0, 0, 0] : f32 from vector<1x1x1xf32>
    %73 = vector.broadcast %72 : f32 to vector<1x1xf32>
    %cst_20 = arith.constant 7.812500e-03 : f32
    %74 = vector.broadcast %cst_20 : f32 to vector<1x1xf32>
    %75 = arith.mulf %73, %74 : vector<1x1xf32>
    %76 = arith.mulf %68, %68 : vector<1x128xf32>
    %77 = vector.shape_cast %76 : vector<1x128xf32> to vector<1x1x128xf32>
    %cst_21 = arith.constant dense<0.000000e+00> : vector<1xf32>
    %78 = vector.multi_reduction <add>, %77, %cst_21 [1, 2] : vector<1x1x128xf32> to vector<1xf32>
    %79 = vector.shape_cast %78 : vector<1xf32> to vector<1x1x1xf32>
    %80 = vector.extract %79[0, 0, 0] : f32 from vector<1x1x1xf32>
    %81 = vector.broadcast %80 : f32 to vector<1x1xf32>
    %cst_22 = arith.constant 7.812500e-03 : f32
    %82 = vector.broadcast %cst_22 : f32 to vector<1x1xf32>
    %83 = arith.mulf %81, %82 : vector<1x1xf32>
    %c0_23 = arith.constant 0 : index
    %c0_24 = arith.constant 0 : index
    %84 = vector.load %arg5[%c0_23, %c0_24] : memref<1x128xf32, #tpu.memory_space<vmem>>, vector<1x128xf32>
    %85 = vector.shape_cast %84 : vector<1x128xf32> to vector<1x1x128xf32>
    %cst_25 = arith.constant dense<0.000000e+00> : vector<1xf32>
    %86 = vector.multi_reduction <add>, %85, %cst_25 [1, 2] : vector<1x1x128xf32> to vector<1xf32>
    %87 = vector.shape_cast %86 : vector<1xf32> to vector<1x1x1xf32>
    %88 = vector.extract %87[0, 0, 0] : f32 from vector<1x1x1xf32>
    %89 = vector.broadcast %88 : f32 to vector<1x1xf32>
    %cst_26 = arith.constant 7.812500e-03 : f32
    %90 = vector.broadcast %cst_26 : f32 to vector<1x1xf32>
    %91 = arith.mulf %89, %90 : vector<1x1xf32>
    %92 = arith.mulf %84, %84 : vector<1x128xf32>
    %93 = vector.shape_cast %92 : vector<1x128xf32> to vector<1x1x128xf32>
    %cst_27 = arith.constant dense<0.000000e+00> : vector<1xf32>
    %94 = vector.multi_reduction <add>, %93, %cst_27 [1, 2] : vector<1x1x128xf32> to vector<1xf32>
    %95 = vector.shape_cast %94 : vector<1xf32> to vector<1x1x1xf32>
    %96 = vector.extract %95[0, 0, 0] : f32 from vector<1x1x1xf32>
    %97 = vector.broadcast %96 : f32 to vector<1x1xf32>
    %cst_28 = arith.constant 7.812500e-03 : f32
    %98 = vector.broadcast %cst_28 : f32 to vector<1x1xf32>
    %99 = arith.mulf %97, %98 : vector<1x1xf32>
    %c0_29 = arith.constant 0 : index
    %c0_30 = arith.constant 0 : index
    %100 = vector.load %arg6[%c0_29, %c0_30] : memref<1x128xf32, #tpu.memory_space<vmem>>, vector<1x128xf32>
    %101 = vector.shape_cast %100 : vector<1x128xf32> to vector<1x1x128xf32>
    %cst_31 = arith.constant dense<0.000000e+00> : vector<1xf32>
    %102 = vector.multi_reduction <add>, %101, %cst_31 [1, 2] : vector<1x1x128xf32> to vector<1xf32>
    %103 = vector.shape_cast %102 : vector<1xf32> to vector<1x1x1xf32>
    %104 = vector.extract %103[0, 0, 0] : f32 from vector<1x1x1xf32>
    %105 = vector.broadcast %104 : f32 to vector<1x1xf32>
    %cst_32 = arith.constant 7.812500e-03 : f32
    %106 = vector.broadcast %cst_32 : f32 to vector<1x1xf32>
    %107 = arith.mulf %105, %106 : vector<1x1xf32>
    %108 = arith.mulf %100, %100 : vector<1x128xf32>
    %109 = vector.shape_cast %108 : vector<1x128xf32> to vector<1x1x128xf32>
    %cst_33 = arith.constant dense<0.000000e+00> : vector<1xf32>
    %110 = vector.multi_reduction <add>, %109, %cst_33 [1, 2] : vector<1x1x128xf32> to vector<1xf32>
    %111 = vector.shape_cast %110 : vector<1xf32> to vector<1x1x1xf32>
    %112 = vector.extract %111[0, 0, 0] : f32 from vector<1x1x1xf32>
    %113 = vector.broadcast %112 : f32 to vector<1x1xf32>
    %cst_34 = arith.constant 7.812500e-03 : f32
    %114 = vector.broadcast %cst_34 : f32 to vector<1x1xf32>
    %115 = arith.mulf %113, %114 : vector<1x1xf32>
    %cst_35 = arith.constant 0.000000e+00 : f32
    %116 = vector.broadcast %cst_35 : f32 to vector<1x1xf32>
    %117 = arith.addf %19, %3 : f32
    %cst_36 = arith.constant 2.000000e+00 : f32
    %118 = arith.mulf %cst_36, %8 : f32
    %119 = vector.broadcast %118 : f32 to vector<1x1xf32>
    %120 = arith.mulf %119, %27 : vector<1x1xf32>
    %121 = arith.subf %35, %120 : vector<1x1xf32>
    %122 = arith.mulf %8, %8 : f32
    %123 = vector.broadcast %122 : f32 to vector<1x1xf32>
    %124 = arith.addf %121, %123 : vector<1x1xf32>
    %cst_37 = arith.constant 2.000000e+00 : f32
    %125 = arith.mulf %cst_37, %13 : f32
    %126 = vector.broadcast %125 : f32 to vector<1x1xf32>
    %127 = arith.mulf %126, %43 : vector<1x1xf32>
    %128 = arith.subf %51, %127 : vector<1x1xf32>
    %129 = arith.mulf %13, %13 : f32
    %130 = vector.broadcast %129 : f32 to vector<1x1xf32>
    %131 = arith.addf %128, %130 : vector<1x1xf32>
    %132 = arith.mulf %19, %19 : f32
    %133 = vector.broadcast %132 : f32 to vector<1x1xf32>
    %134 = arith.addf %133, %124 : vector<1x1xf32>
    %135 = arith.addf %134, %131 : vector<1x1xf32>
    %cst_38 = arith.constant -2.000000e+00 : f32
    %136 = arith.mulf %cst_38, %117 : f32
    %137 = vector.broadcast %136 : f32 to vector<1x1xf32>
    %138 = arith.mulf %137, %27 : vector<1x1xf32>
    %139 = arith.addf %135, %138 : vector<1x1xf32>
    %cst_39 = arith.constant -2.000000e+00 : f32
    %140 = arith.mulf %cst_39, %117 : f32
    %141 = vector.broadcast %140 : f32 to vector<1x1xf32>
    %142 = arith.mulf %141, %43 : vector<1x1xf32>
    %143 = arith.subf %139, %142 : vector<1x1xf32>
    %144 = vector.broadcast %18 : f32 to vector<1x1xf32>
    %145 = arith.mulf %144, %143 : vector<1x1xf32>
    %146 = vector.broadcast %0 : f32 to vector<1x1xf32>
    %147 = arith.mulf %146, %145 : vector<1x1xf32>
    %148 = arith.addf %116, %147 : vector<1x1xf32>
    %149 = arith.addf %19, %4 : f32
    %cst_40 = arith.constant 2.000000e+00 : f32
    %150 = arith.mulf %cst_40, %9 : f32
    %151 = vector.broadcast %150 : f32 to vector<1x1xf32>
    %152 = arith.mulf %151, %59 : vector<1x1xf32>
    %153 = arith.subf %67, %152 : vector<1x1xf32>
    %154 = arith.mulf %9, %9 : f32
    %155 = vector.broadcast %154 : f32 to vector<1x1xf32>
    %156 = arith.addf %153, %155 : vector<1x1xf32>
    %cst_41 = arith.constant 2.000000e+00 : f32
    %157 = arith.mulf %cst_41, %14 : f32
    %158 = vector.broadcast %157 : f32 to vector<1x1xf32>
    %159 = arith.mulf %158, %91 : vector<1x1xf32>
    %160 = arith.subf %99, %159 : vector<1x1xf32>
    %161 = arith.mulf %14, %14 : f32
    %162 = vector.broadcast %161 : f32 to vector<1x1xf32>
    %163 = arith.addf %160, %162 : vector<1x1xf32>
    %164 = arith.mulf %19, %19 : f32
    %165 = vector.broadcast %164 : f32 to vector<1x1xf32>
    %166 = arith.addf %165, %156 : vector<1x1xf32>
    %167 = arith.addf %166, %163 : vector<1x1xf32>
    %cst_42 = arith.constant 2.000000e+00 : f32
    %168 = arith.mulf %cst_42, %149 : f32
    %169 = vector.broadcast %168 : f32 to vector<1x1xf32>
    %170 = arith.mulf %169, %59 : vector<1x1xf32>
    %171 = arith.addf %167, %170 : vector<1x1xf32>
    %cst_43 = arith.constant 2.000000e+00 : f32
    %172 = arith.mulf %cst_43, %149 : f32
    %173 = vector.broadcast %172 : f32 to vector<1x1xf32>
    %174 = arith.mulf %173, %91 : vector<1x1xf32>
    %175 = arith.subf %171, %174 : vector<1x1xf32>
    %176 = vector.broadcast %18 : f32 to vector<1x1xf32>
    %177 = arith.mulf %176, %175 : vector<1x1xf32>
    %178 = vector.broadcast %1 : f32 to vector<1x1xf32>
    %179 = arith.mulf %178, %177 : vector<1x1xf32>
    %180 = arith.addf %148, %179 : vector<1x1xf32>
    %181 = arith.addf %19, %5 : f32
    %cst_44 = arith.constant 2.000000e+00 : f32
    %182 = arith.mulf %cst_44, %10 : f32
    %183 = vector.broadcast %182 : f32 to vector<1x1xf32>
    %184 = arith.mulf %183, %107 : vector<1x1xf32>
    %185 = arith.subf %115, %184 : vector<1x1xf32>
    %186 = arith.mulf %10, %10 : f32
    %187 = vector.broadcast %186 : f32 to vector<1x1xf32>
    %188 = arith.addf %185, %187 : vector<1x1xf32>
    %cst_45 = arith.constant 2.000000e+00 : f32
    %189 = arith.mulf %cst_45, %15 : f32
    %190 = vector.broadcast %189 : f32 to vector<1x1xf32>
    %191 = arith.mulf %190, %75 : vector<1x1xf32>
    %192 = arith.subf %83, %191 : vector<1x1xf32>
    %193 = arith.mulf %15, %15 : f32
    %194 = vector.broadcast %193 : f32 to vector<1x1xf32>
    %195 = arith.addf %192, %194 : vector<1x1xf32>
    %196 = arith.mulf %19, %19 : f32
    %197 = vector.broadcast %196 : f32 to vector<1x1xf32>
    %198 = arith.addf %197, %188 : vector<1x1xf32>
    %199 = arith.addf %198, %195 : vector<1x1xf32>
    %cst_46 = arith.constant 2.000000e+00 : f32
    %200 = arith.mulf %cst_46, %181 : f32
    %201 = vector.broadcast %200 : f32 to vector<1x1xf32>
    %202 = arith.mulf %201, %107 : vector<1x1xf32>
    %203 = arith.addf %199, %202 : vector<1x1xf32>
    %cst_47 = arith.constant 2.000000e+00 : f32
    %204 = arith.mulf %cst_47, %181 : f32
    %205 = vector.broadcast %204 : f32 to vector<1x1xf32>
    %206 = arith.mulf %205, %75 : vector<1x1xf32>
    %207 = arith.subf %203, %206 : vector<1x1xf32>
    %208 = vector.broadcast %18 : f32 to vector<1x1xf32>
    %209 = arith.mulf %208, %207 : vector<1x1xf32>
    %210 = vector.broadcast %1 : f32 to vector<1x1xf32>
    %211 = arith.mulf %210, %209 : vector<1x1xf32>
    %212 = arith.addf %180, %211 : vector<1x1xf32>
    %213 = arith.addf %19, %6 : f32
    %cst_48 = arith.constant 2.000000e+00 : f32
    %214 = arith.mulf %cst_48, %11 : f32
    %215 = vector.broadcast %214 : f32 to vector<1x1xf32>
    %216 = arith.mulf %215, %75 : vector<1x1xf32>
    %217 = arith.subf %83, %216 : vector<1x1xf32>
    %218 = arith.mulf %11, %11 : f32
    %219 = vector.broadcast %218 : f32 to vector<1x1xf32>
    %220 = arith.addf %217, %219 : vector<1x1xf32>
    %cst_49 = arith.constant 2.000000e+00 : f32
    %221 = arith.mulf %cst_49, %16 : f32
    %222 = vector.broadcast %221 : f32 to vector<1x1xf32>
    %223 = arith.mulf %222, %107 : vector<1x1xf32>
    %224 = arith.subf %115, %223 : vector<1x1xf32>
    %225 = arith.mulf %16, %16 : f32
    %226 = vector.broadcast %225 : f32 to vector<1x1xf32>
    %227 = arith.addf %224, %226 : vector<1x1xf32>
    %228 = arith.mulf %19, %19 : f32
    %229 = vector.broadcast %228 : f32 to vector<1x1xf32>
    %230 = arith.addf %229, %220 : vector<1x1xf32>
    %231 = arith.addf %230, %227 : vector<1x1xf32>
    %cst_50 = arith.constant 2.000000e+00 : f32
    %232 = arith.mulf %cst_50, %213 : f32
    %233 = vector.broadcast %232 : f32 to vector<1x1xf32>
    %234 = arith.mulf %233, %75 : vector<1x1xf32>
    %235 = arith.addf %231, %234 : vector<1x1xf32>
    %cst_51 = arith.constant 2.000000e+00 : f32
    %236 = arith.mulf %cst_51, %213 : f32
    %237 = vector.broadcast %236 : f32 to vector<1x1xf32>
    %238 = arith.mulf %237, %107 : vector<1x1xf32>
    %239 = arith.subf %235, %238 : vector<1x1xf32>
    %240 = vector.broadcast %18 : f32 to vector<1x1xf32>
    %241 = arith.mulf %240, %239 : vector<1x1xf32>
    %242 = vector.broadcast %2 : f32 to vector<1x1xf32>
    %243 = arith.mulf %242, %241 : vector<1x1xf32>
    %244 = arith.addf %212, %243 : vector<1x1xf32>
    %245 = arith.addf %19, %7 : f32
    %cst_52 = arith.constant 2.000000e+00 : f32
    %246 = arith.mulf %cst_52, %12 : f32
    %247 = vector.broadcast %246 : f32 to vector<1x1xf32>
    %248 = arith.mulf %247, %91 : vector<1x1xf32>
    %249 = arith.subf %99, %248 : vector<1x1xf32>
    %250 = arith.mulf %12, %12 : f32
    %251 = vector.broadcast %250 : f32 to vector<1x1xf32>
    %252 = arith.addf %249, %251 : vector<1x1xf32>
    %cst_53 = arith.constant 2.000000e+00 : f32
    %253 = arith.mulf %cst_53, %17 : f32
    %254 = vector.broadcast %253 : f32 to vector<1x1xf32>
    %255 = arith.mulf %254, %59 : vector<1x1xf32>
    %256 = arith.subf %67, %255 : vector<1x1xf32>
    %257 = arith.mulf %17, %17 : f32
    %258 = vector.broadcast %257 : f32 to vector<1x1xf32>
    %259 = arith.addf %256, %258 : vector<1x1xf32>
    %260 = arith.mulf %19, %19 : f32
    %261 = vector.broadcast %260 : f32 to vector<1x1xf32>
    %262 = arith.addf %261, %252 : vector<1x1xf32>
    %263 = arith.addf %262, %259 : vector<1x1xf32>
    %cst_54 = arith.constant 2.000000e+00 : f32
    %264 = arith.mulf %cst_54, %245 : f32
    %265 = vector.broadcast %264 : f32 to vector<1x1xf32>
    %266 = arith.mulf %265, %91 : vector<1x1xf32>
    %267 = arith.addf %263, %266 : vector<1x1xf32>
    %cst_55 = arith.constant 2.000000e+00 : f32
    %268 = arith.mulf %cst_55, %245 : f32
    %269 = vector.broadcast %268 : f32 to vector<1x1xf32>
    %270 = arith.mulf %269, %59 : vector<1x1xf32>
    %271 = arith.subf %267, %270 : vector<1x1xf32>
    %272 = vector.broadcast %18 : f32 to vector<1x1xf32>
    %273 = arith.mulf %272, %271 : vector<1x1xf32>
    %274 = vector.broadcast %2 : f32 to vector<1x1xf32>
    %275 = arith.mulf %274, %273 : vector<1x1xf32>
    %276 = arith.addf %244, %275 : vector<1x1xf32>
    %c0_56 = arith.constant 0 : index
    %c0_57 = arith.constant 0 : index
    %277 = vector.load %arg7[%c0_56, %c0_57] : memref<1x1xf32, #tpu.memory_space<vmem>>, vector<1x1xf32>
    tpu.vector_store %arg7[%c0_56, %c0_57], %276 {strides = array<i32>} : memref<1x1xf32, #tpu.memory_space<vmem>>, vector<1x1xf32>,
    return
  }
}

</mosaic_0001>

<llo_original>
// kernel: tpu_custom_call.1
$region0: #{tpu_custom_call.1}
  #allocation0 [shape = 'u32[]', space=smem, size = 0x4, offset = 0x4, fixed_abs, tag = 'smem constant byte address 0x4 - core index']
  #allocation1 [shape = 'u32[144,128]{1,0:T(1,128)}', space=vmem, size = 0x12000, scoped, tag = 'internal scratch']
  %s0 = inlined_call_operand.hbm [shape: f32[20], index: 0, kind: input, shape index: {}]
  %s1 = inlined_call_operand.vmem [shape: f32[1,128], index: 1, kind: input, shape index: {}]
  %s2 = inlined_call_operand.vmem [shape: f32[1,128], index: 2, kind: input, shape index: {}]
  %s3 = inlined_call_operand.vmem [shape: f32[1,128], index: 3, kind: input, shape index: {}]
  %s4 = inlined_call_operand.vmem [shape: f32[1,128], index: 4, kind: input, shape index: {}]
  %s5 = inlined_call_operand.vmem [shape: f32[1,128], index: 5, kind: input, shape index: {}]
  %s6 = inlined_call_operand.vmem [shape: f32[1,128], index: 6, kind: input, shape index: {}]
  %s7 = inlined_call_operand.hbm [shape: f32[1,1], index: 7, kind: output, shape index: {}]
  %s8 = sld [smem:[#allocation0]]
  $region42: #{tpu_custom_call.1} parent=0
    _
  %s10 = ssub.s32 1, %s8
  %s11 = scalar_select 0, %s10, %s8
  $region1: #{tpu_custom_call.1} parent=0
    #allocation2 [shape = 'u8[512]{0}', space=smem, size = 0x200, scoped, tag = 'input window, operand 0, single buffered']
    #allocation3 [shape = 's32[1]{0}', space=sflag, size = 0x4, scoped, tag = 'scoped memory for tpu_custom_call.1']
    #allocation4 [shape = 's32[1]{0}', space=sflag, size = 0x4, scoped, tag = 'scoped memory for tpu_custom_call.1']
    #allocation5 [shape = 'u8[512]{0}', space=vmem, size = 0x400, scoped, tag = 'output window, operand 0, single buffered']
    %12 = vsyncpa [#allocation4], 0
    %13 = vsyncpa [#allocation3], 0
    // Predicated region
    $region2: #{tpu_custom_call.1} parent=1 // pred_check
      _
    $region3: #{tpu_custom_call.1} parent=1 // pred_check_branch
      %15 = sbr.rel (0) target = $region5
    $region4: #{tpu_custom_call.1} parent=1 // pred_region
      %s17 = ssub.s32 16, 16
      %18 = vsyncadd [#allocation4], %s17
      %21 = dma.hbm_to_smem %s0, 16, [#allocation2], [#allocation4]
    $region5: #{tpu_custom_call.1} parent=1 // pred_fallthru
      _
    // Predicated region
    $region6: #{tpu_custom_call.1} parent=1 // pred_check
      _
    $region7: #{tpu_custom_call.1} parent=1 // pred_check_branch
      %23 = sbr.rel (0) target = $region9
    $region8: #{tpu_custom_call.1} parent=1 // pred_region
      _
    $region9: #{tpu_custom_call.1} parent=1 // pred_fallthru
      _
    // Predicated region
    $region10: #{tpu_custom_call.1} parent=1 // pred_check
      _
    $region11: #{tpu_custom_call.1} parent=1 // pred_check_branch
      %25 = sbr.rel (0) target = $region13
    $region12: #{tpu_custom_call.1} parent=1 // pred_region
      _
    $region13: #{tpu_custom_call.1} parent=1 // pred_fallthru
      _
    // Predicated region
    $region14: #{tpu_custom_call.1} parent=1 // pred_check
      _
    $region15: #{tpu_custom_call.1} parent=1 // pred_check_branch
      %27 = sbr.rel (0) target = $region17
    $region16: #{tpu_custom_call.1} parent=1 // pred_region
      _
    $region17: #{tpu_custom_call.1} parent=1 // pred_fallthru
      _
    // Predicated region
    $region18: #{tpu_custom_call.1} parent=1 // pred_check
      _
    $region19: #{tpu_custom_call.1} parent=1 // pred_check_branch
      %29 = sbr.rel (0) target = $region21
    $region20: #{tpu_custom_call.1} parent=1 // pred_region
      _
    $region21: #{tpu_custom_call.1} parent=1 // pred_fallthru
      _
    // Predicated region
    $region22: #{tpu_custom_call.1} parent=1 // pred_check
      _
    $region23: #{tpu_custom_call.1} parent=1 // pred_check_branch
      %31 = sbr.rel (0) target = $region25
    $region24: #{tpu_custom_call.1} parent=1 // pred_region
      _
    $region25: #{tpu_custom_call.1} parent=1 // pred_fallthru
      _
    // Predicated region
    $region26: #{tpu_custom_call.1} parent=1 // pred_check
      _
    $region27: #{tpu_custom_call.1} parent=1 // pred_check_branch
      %33 = sbr.rel (0) target = $region29
    $region28: #{tpu_custom_call.1} parent=1 // pred_region
      _
    $region29: #{tpu_custom_call.1} parent=1 // pred_fallthru
      _
    // Predicated region
    $region30: #{tpu_custom_call.1} parent=1 // pred_check
      _
    $region31: #{tpu_custom_call.1} parent=1 // pred_check_branch
      %35 = sbr.rel (0) target = $region33
    $region32: #{tpu_custom_call.1} parent=1 // pred_region
      %36 = dma.done [#allocation4], 16
    $region33: #{tpu_custom_call.1} parent=1 // pred_fallthru
      _
    %37 = sfence
    %s38 = sld [smem:[#allocation2]]
    %s39 = sld [smem:[#allocation2 + $0x1]]
    %s40 = sld [smem:[#allocation2 + $0x2]]
    %s41 = sld [smem:[#allocation2 + $0x3]]
    %s42 = sld [smem:[#allocation2 + $0x4]]
    %s43 = sld [smem:[#allocation2 + $0x5]]
    %s44 = sld [smem:[#allocation2 + $0x6]]
    %s45 = sld [smem:[#allocation2 + $0x7]]
    %s46 = sld [smem:[#allocation2 + $0x8]]
    %s47 = sld [smem:[#allocation2 + $0x9]]
    %s48 = sld [smem:[#allocation2 + $0xa]]
    %s49 = sld [smem:[#allocation2 + $0xb]]
    %s50 = sld [smem:[#allocation2 + $0xc]]
    %s51 = sld [smem:[#allocation2 + $0xd]]
    %s52 = sld [smem:[#allocation2 + $0xe]]
    %s53 = sld [smem:[#allocation2 + $0xf]]
    %s54 = sld [smem:[#allocation2 + $0x10]]
    %s55 = sld [smem:[#allocation2 + $0x11]]
    %s56 = sld [smem:[#allocation2 + $0x12]]
    %s57 = sld [smem:[#allocation2 + $0x13]]
    %v58 = vld [vmem:[%s1] sm:$0x1]
    %vm59 = vcmask 1040384
    %v60 = vsel %vm59, %v58, 0.0
    %61 = vadd.xlane.f32.xlu0 %v60
    %v62 = vpop.xlane.xlu0 %61
    %v63 = vrot.slane %v62, 4
    %v64 = vadd.f32 %v62, %v63
    %v65 = vrot.slane %v64, 2
    %v66 = vadd.f32 %v64, %v65
    %v67 = vrot.slane %v66, 1
    %v68 = vadd.f32 %v66, %v67
    %s69 = vtos %v68
    %v70 = vstv %s69
    %v71 = vmul.f32 %v70, 0.0078125
    %v72 = vmul.f32 %v58, %v58
    %v73 = vsel %vm59, %v72, 0.0
    %74 = vadd.xlane.f32.xlu0 %v73
    %v75 = vpop.xlane.xlu0 %74
    %v76 = vrot.slane %v75, 4
    %v77 = vadd.f32 %v75, %v76
    %v78 = vrot.slane %v77, 2
    %v79 = vadd.f32 %v77, %v78
    %v80 = vrot.slane %v79, 1
    %v81 = vadd.f32 %v79, %v80
    %s82 = vtos %v81
    %v83 = vstv %s82
    %v84 = vmul.f32 %v83, 0.0078125
    %v85 = vld [vmem:[%s2] sm:$0x1]
    %v86 = vsel %vm59, %v85, 0.0
    %87 = vadd.xlane.f32.xlu0 %v86
    %v88 = vpop.xlane.xlu0 %87
    %v89 = vrot.slane %v88, 4
    %v90 = vadd.f32 %v88, %v89
    %v91 = vrot.slane %v90, 2
    %v92 = vadd.f32 %v90, %v91
    %v93 = vrot.slane %v92, 1
    %v94 = vadd.f32 %v92, %v93
    %s95 = vtos %v94
    %v96 = vstv %s95
    %v97 = vmul.f32 %v96, 0.0078125
    %v98 = vmul.f32 %v85, %v85
    %v99 = vsel %vm59, %v98, 0.0
    %100 = vadd.xlane.f32.xlu0 %v99
    %v101 = vpop.xlane.xlu0 %100
    %v102 = vrot.slane %v101, 4
    %v103 = vadd.f32 %v101, %v102
    %v104 = vrot.slane %v103, 2
    %v105 = vadd.f32 %v103, %v104
    %v106 = vrot.slane %v105, 1
    %v107 = vadd.f32 %v105, %v106
    %s108 = vtos %v107
    %v109 = vstv %s108
    %v110 = vmul.f32 %v109, 0.0078125
    %v111 = vld [vmem:[%s3] sm:$0x1]
    %v112 = vsel %vm59, %v111, 0.0
    %113 = vadd.xlane.f32.xlu0 %v112
    %v114 = vpop.xlane.xlu0 %113
    %v115 = vrot.slane %v114, 4
    %v116 = vadd.f32 %v114, %v115
    %v117 = vrot.slane %v116, 2
    %v118 = vadd.f32 %v116, %v117
    %v119 = vrot.slane %v118, 1
    %v120 = vadd.f32 %v118, %v119
    %s121 = vtos %v120
    %v122 = vstv %s121
    %v123 = vmul.f32 %v122, 0.0078125
    %v124 = vmul.f32 %v111, %v111
    %v125 = vsel %vm59, %v124, 0.0
    %126 = vadd.xlane.f32.xlu0 %v125
    %v127 = vpop.xlane.xlu0 %126
    %v128 = vrot.slane %v127, 4
    %v129 = vadd.f32 %v127, %v128
    %v130 = vrot.slane %v129, 2
    %v131 = vadd.f32 %v129, %v130
    %v132 = vrot.slane %v131, 1
    %v133 = vadd.f32 %v131, %v132
    %s134 = vtos %v133
    %v135 = vstv %s134
    %v136 = vmul.f32 %v135, 0.0078125
    %v137 = vld [vmem:[%s4] sm:$0x1]
    %v138 = vsel %vm59, %v137, 0.0
    %139 = vadd.xlane.f32.xlu0 %v138
    %v140 = vpop.xlane.xlu0 %139
    %v141 = vrot.slane %v140, 4
    %v142 = vadd.f32 %v140, %v141
    %v143 = vrot.slane %v142, 2
    %v144 = vadd.f32 %v142, %v143
    %v145 = vrot.slane %v144, 1
    %v146 = vadd.f32 %v144, %v145
    %s147 = vtos %v146
    %v148 = vstv %s147
    %v149 = vmul.f32 %v148, 0.0078125
    %v150 = vmul.f32 %v137, %v137
    %v151 = vsel %vm59, %v150, 0.0
    %152 = vadd.xlane.f32.xlu0 %v151
    %v153 = vpop.xlane.xlu0 %152
    %v154 = vrot.slane %v153, 4
    %v155 = vadd.f32 %v153, %v154
    %v156 = vrot.slane %v155, 2
    %v157 = vadd.f32 %v155, %v156
    %v158 = vrot.slane %v157, 1
    %v159 = vadd.f32 %v157, %v158
    %s160 = vtos %v159
    %v161 = vstv %s160
    %v162 = vmul.f32 %v161, 0.0078125
    %v163 = vld [vmem:[%s5] sm:$0x1]
    %v164 = vsel %vm59, %v163, 0.0
    %165 = vadd.xlane.f32.xlu0 %v164
    %v166 = vpop.xlane.xlu0 %165
    %v167 = vrot.slane %v166, 4
    %v168 = vadd.f32 %v166, %v167
    %v169 = vrot.slane %v168, 2
    %v170 = vadd.f32 %v168, %v169
    %v171 = vrot.slane %v170, 1
    %v172 = vadd.f32 %v170, %v171
    %s173 = vtos %v172
    %v174 = vstv %s173
    %v175 = vmul.f32 %v174, 0.0078125
    %v176 = vmul.f32 %v163, %v163
    %v177 = vsel %vm59, %v176, 0.0
    %178 = vadd.xlane.f32.xlu0 %v177
    %v179 = vpop.xlane.xlu0 %178
    %v180 = vrot.slane %v179, 4
    %v181 = vadd.f32 %v179, %v180
    %v182 = vrot.slane %v181, 2
    %v183 = vadd.f32 %v181, %v182
    %v184 = vrot.slane %v183, 1
    %v185 = vadd.f32 %v183, %v184
    %s186 = vtos %v185
    %v187 = vstv %s186
    %v188 = vmul.f32 %v187, 0.0078125
    %v189 = vld [vmem:[%s6] sm:$0x1]
    %v190 = vsel %vm59, %v189, 0.0
    %191 = vadd.xlane.f32.xlu0 %v190
    %v192 = vpop.xlane.xlu0 %191
    %v193 = vrot.slane %v192, 4
    %v194 = vadd.f32 %v192, %v193
    %v195 = vrot.slane %v194, 2
    %v196 = vadd.f32 %v194, %v195
    %v197 = vrot.slane %v196, 1
    %v198 = vadd.f32 %v196, %v197
    %s199 = vtos %v198
    %v200 = vstv %s199
    %v201 = vmul.f32 %v200, 0.0078125
    %v202 = vmul.f32 %v189, %v189
    %v203 = vsel %vm59, %v202, 0.0
    %204 = vadd.xlane.f32.xlu0 %v203
    %v205 = vpop.xlane.xlu0 %204
    %v206 = vrot.slane %v205, 4
    %v207 = vadd.f32 %v205, %v206
    %v208 = vrot.slane %v207, 2
    %v209 = vadd.f32 %v207, %v208
    %v210 = vrot.slane %v209, 1
    %v211 = vadd.f32 %v209, %v210
    %s212 = vtos %v211
    %v213 = vstv %s212
    %v214 = vmul.f32 %v213, 0.0078125
    %s215 = sadd.f32 %s57, %s41
    %s216 = smul.f32 %s46, 2.0
    %v217 = vstv %s216
    %v218 = vmul.f32 %v217, %v71
    %v219 = vsub.f32 %v84, %v218
    %s220 = smul.f32 %s46, %s46
    %v221 = vstv %s220
    %v222 = vadd.f32 %v219, %v221
    %s223 = smul.f32 %s51, 2.0
    %v224 = vstv %s223
    %v225 = vmul.f32 %v224, %v97
    %v226 = vsub.f32 %v110, %v225
    %s227 = smul.f32 %s51, %s51
    %v228 = vstv %s227
    %v229 = vadd.f32 %v226, %v228
    %s230 = smul.f32 %s57, %s57
    %v231 = vstv %s230
    %v232 = vadd.f32 %v231, %v222
    %v233 = vadd.f32 %v232, %v229
    %s234 = smul.f32 %s215, -2.0
    %v235 = vstv %s234
    %v236 = vmul.f32 %v235, %v71
    %v237 = vadd.f32 %v233, %v236
    %v238 = vmul.f32 %v235, %v97
    %v239 = vsub.f32 %v237, %v238
    %v240 = vstv %s56
    %v241 = vmul.f32 %v240, %v239
    %v242 = vstv %s38
    %v243 = vmul.f32 %v242, %v241
    %v244 = vadd.f32 %v243, 0.0
    %s245 = sadd.f32 %s57, %s42
    %s246 = smul.f32 %s47, 2.0
    %v247 = vstv %s246
    %v248 = vmul.f32 %v247, %v123
    %v249 = vsub.f32 %v136, %v248
    %s250 = smul.f32 %s47, %s47
    %v251 = vstv %s250
    %v252 = vadd.f32 %v249, %v251
    %s253 = smul.f32 %s52, 2.0
    %v254 = vstv %s253
    %v255 = vmul.f32 %v254, %v175
    %v256 = vsub.f32 %v188, %v255
    %s257 = smul.f32 %s52, %s52
    %v258 = vstv %s257
    %v259 = vadd.f32 %v256, %v258
    %v260 = vadd.f32 %v231, %v252
    %v261 = vadd.f32 %v260, %v259
    %s262 = smul.f32 %s245, 2.0
    %v263 = vstv %s262
    %v264 = vmul.f32 %v263, %v123
    %v265 = vadd.f32 %v261, %v264
    %v266 = vmul.f32 %v263, %v175
    %v267 = vsub.f32 %v265, %v266
    %v268 = vmul.f32 %v240, %v267
    %v269 = vstv %s39
    %v270 = vmul.f32 %v269, %v268
    %v271 = vadd.f32 %v244, %v270
    %s272 = sadd.f32 %s57, %s43
    %s273 = smul.f32 %s48, 2.0
    %v274 = vstv %s273
    %v275 = vmul.f32 %v274, %v201
    %v276 = vsub.f32 %v214, %v275
    %s277 = smul.f32 %s48, %s48
    %v278 = vstv %s277
    %v279 = vadd.f32 %v276, %v278
    %s280 = smul.f32 %s53, 2.0
    %v281 = vstv %s280
    %v282 = vmul.f32 %v281, %v149
    %v283 = vsub.f32 %v162, %v282
    %s284 = smul.f32 %s53, %s53
    %v285 = vstv %s284
    %v286 = vadd.f32 %v283, %v285
    %v287 = vadd.f32 %v231, %v279
    %v288 = vadd.f32 %v287, %v286
    %s289 = smul.f32 %s272, 2.0
    %v290 = vstv %s289
    %v291 = vmul.f32 %v290, %v201
    %v292 = vadd.f32 %v288, %v291
    %v293 = vmul.f32 %v290, %v149
    %v294 = vsub.f32 %v292, %v293
    %v295 = vmul.f32 %v240, %v294
    %v296 = vmul.f32 %v269, %v295
    %v297 = vadd.f32 %v271, %v296
    %s298 = sadd.f32 %s57, %s44
    %s299 = smul.f32 %s49, 2.0
    %v300 = vstv %s299
    %v301 = vmul.f32 %v300, %v149
    %v302 = vsub.f32 %v162, %v301
    %s303 = smul.f32 %s49, %s49
    %v304 = vstv %s303
    %v305 = vadd.f32 %v302, %v304
    %s306 = smul.f32 %s54, 2.0
    %v307 = vstv %s306
    %v308 = vmul.f32 %v307, %v201
    %v309 = vsub.f32 %v214, %v308
    %s310 = smul.f32 %s54, %s54
    %v311 = vstv %s310
    %v312 = vadd.f32 %v309, %v311
    %v313 = vadd.f32 %v231, %v305
    %v314 = vadd.f32 %v313, %v312
    %s315 = smul.f32 %s298, 2.0
    %v316 = vstv %s315
    %v317 = vmul.f32 %v316, %v149
    %v318 = vadd.f32 %v314, %v317
    %v319 = vmul.f32 %v316, %v201
    %v320 = vsub.f32 %v318, %v319
    %v321 = vmul.f32 %v240, %v320
    %v322 = vstv %s40
    %v323 = vmul.f32 %v322, %v321
    %v324 = vadd.f32 %v297, %v323
    %s325 = sadd.f32 %s57, %s45
    %s326 = smul.f32 %s50, 2.0
    %v327 = vstv %s326
    %v328 = vmul.f32 %v327, %v175
    %v329 = vsub.f32 %v188, %v328
    %s330 = smul.f32 %s50, %s50
    %v331 = vstv %s330
    %v332 = vadd.f32 %v329, %v331
    %s333 = smul.f32 %s55, 2.0
    %v334 = vstv %s333
    %v335 = vmul.f32 %v334, %v123
    %v336 = vsub.f32 %v136, %v335
    %s337 = smul.f32 %s55, %s55
    %v338 = vstv %s337
    %v339 = vadd.f32 %v336, %v338
    %v340 = vadd.f32 %v231, %v332
    %v341 = vadd.f32 %v340, %v339
    %s342 = smul.f32 %s325, 2.0
    %v343 = vstv %s342
    %v344 = vmul.f32 %v343, %v175
    %v345 = vadd.f32 %v341, %v344
    %v346 = vmul.f32 %v343, %v123
    %v347 = vsub.f32 %v345, %v346
    %v348 = vmul.f32 %v240, %v347
    %v349 = vmul.f32 %v322, %v348
    %v350 = vadd.f32 %v324, %v349
    %vm351 = vcmask 0
    %352 = vst.msk [vmem:[#allocation5] sm:$0x1] %vm351, %v350
    // Predicated region
    $region34: #{tpu_custom_call.1} parent=1 // pred_check
      _
    $region35: #{tpu_custom_call.1} parent=1 // pred_check_branch
      %354 = sbr.rel (0) target = $region37
    $region36: #{tpu_custom_call.1} parent=1 // pred_region
      %s356 = ssub.s32 16, 16
      %357 = vsyncadd [#allocation3], %s356
      %s359 = sshll.u32 [#allocation5], 4
      %s360 = int_to_ptr.vmem [resolvable:$true] %s359
      %362 = dma.vmem_to_hbm [thread:$0]  %s360, 16, %s7, [#allocation3]
    $region37: #{tpu_custom_call.1} parent=1 // pred_fallthru
      _
    // Predicated region
    $region38: #{tpu_custom_call.1} parent=1 // pred_check
      _
    $region39: #{tpu_custom_call.1} parent=1 // pred_check_branch
      %364 = sbr.rel (0) target = $region41
    $region40: #{tpu_custom_call.1} parent=1 // pred_region
      %365 = dma.done [#allocation3], 16
    $region41: #{tpu_custom_call.1} parent=1 // pred_fallthru
      _
    %366 = vsyncpa [#allocation3], 1
    %367 = vsyncpa [#allocation4], 1

</llo_original>
